<compile_context>
chip_gen: v7x
topology: tpu7x:2x2x1
jax: 0.10.0
libtpu: 0.0.40
codegen_flags: <defaults>
</compile_context>

<pallas_src>
import numpy as np
import jax
import jax.numpy as jnp
from jax.experimental import pallas as pl
from jax.experimental.pallas import tpu as pltpu


# ---------------------------------------------------------------------------
# Static slice construction (literal port of DebedderNeuron.get_kernel_slices)
# ---------------------------------------------------------------------------
def get_kernel_slices(index_dict):
    slice_lst = []
    n_layers = len(index_dict['layer'])
    for idx in range(n_layers):
        kernel_slice_lst = []
        for kernel_dx in range(index_dict['kernel_no'][idx]):
            kernel_start = (index_dict['idx_start'][idx]
                            + kernel_dx * index_dict['kernel_size'][idx]
                            * index_dict['channels_in'][idx])
            kernel_end = (kernel_start
                          + index_dict['kernel_size'][idx] * index_dict['channels_in'][idx])
            bias = (index_dict['idx_start'][idx]
                    + index_dict['kernel_no'][idx] * index_dict['kernel_size'][idx]
                    * index_dict['channels_in'][idx] + kernel_dx)
            index_kernel = list(range(kernel_start, kernel_end))
            index_kernel.append(bias)
            if idx < n_layers - 1:
                for kernel_dx_next in range(index_dict['kernel_no'][idx + 1]):
                    kernel_next_start = (index_dict['idx_start'][idx + 1]
                                         + kernel_dx * index_dict['kernel_size'][idx + 1]
                                         + kernel_dx_next * index_dict['channels_in'][idx + 1]
                                         * index_dict['kernel_size'][idx + 1])
                    kernel_next_end = kernel_next_start + index_dict['kernel_size'][idx + 1]
                    index_kernel.extend(list(range(kernel_next_start, kernel_next_end)))
            kernel_slice_lst.append(index_kernel)
        slice_lst.append(kernel_slice_lst)
    return slice_lst


def _round_up(v, m):
    return ((v + m - 1) // m) * m


# ---------------------------------------------------------------------------
# Pallas kernel: block-sparse tiled matmul  y = x @ W + b
#   tbl_ref[j, k]  : k-block index (into W rows / x k-slabs) of the k-th
#                    nonzero tile for output column block j (SMEM, prefetched)
#   x_ref          : (n_kblocks_ext, TM, TK) bf16, resident per i block
#   w_ref          : (TK, TN) bf16 tile of the dense folded W (fetched only
#                    for nonzero blocks, via the table-driven index_map)
#   b_ref          : (1, TN) f32 folded bias tile
#   o_ref          : (TM, TN) f32 output block, k-invariant -> accumulator
# ---------------------------------------------------------------------------
def _debedder_kernel(tbl_ref, x_ref, w_ref, b_ref, o_ref):
    j = pl.program_id(1)
    k = pl.program_id(2)
    kb = tbl_ref[j, k]                      # dynamic leading-dim index into x slab
    part = jnp.dot(x_ref[kb], w_ref[...], preferred_element_type=jnp.float32)

    @pl.when(k == 0)
    def _():
        o_ref[...] = part + b_ref[...]      # f32 bias epilogue folded into init

    @pl.when(k > 0)
    def _():
        o_ref[...] += part


def debedder_matmul(tbl, x3, w, b, *, tm, tn, vmem_limit_bytes=None):
    """y[b, p] = sum_k x[b, k] * w[k, p] + b[p], skipping all-zero W tiles.

    tbl: (n_jblocks, max_nnz) int32 nonzero k-block table (scalar-prefetched).
    x3 : (n_kblocks_ext, Bp, TK) bf16  (padded, k-split, resident in VMEM).
    w  : (Kp_ext, Np) bf16 dense folded weights (only nonzero tiles are read).
    b  : (1, Np) f32 folded bias.
    """
    nkx, Bp, tk = x3.shape
    Kp_ext, Np = w.shape
    assert Kp_ext == nkx * tk and Bp % tm == 0 and Np % tn == 0
    njb = Np // tn
    max_nnz = tbl.shape[1]
    assert tbl.shape[0] == njb

    params = dict(dimension_semantics=("parallel", "parallel", "arbitrary"))
    if vmem_limit_bytes is not None:
        params["vmem_limit_bytes"] = int(vmem_limit_bytes)

    return pl.pallas_call(
        _debedder_kernel,
        out_shape=jax.ShapeDtypeStruct((Bp, Np), jnp.float32),
        grid_spec=pltpu.PrefetchScalarGridSpec(
            num_scalar_prefetch=1,
            grid=(Bp // tm, njb, max_nnz),
            in_specs=[
                # x slab: depends on i only -> DMA'd once per i block.
                pl.BlockSpec((nkx, tm, tk), lambda i, j, k, tbl_r: (0, i, 0)),
                # W tile: table-driven row-block -> zero tiles never touch HBM.
                pl.BlockSpec((tk, tn), lambda i, j, k, tbl_r: (tbl_r[j, k], j)),
                # folded bias tile (f32).
                pl.BlockSpec((1, tn), lambda i, j, k, tbl_r: (0, j)),
            ],
            out_specs=pl.BlockSpec((tm, tn), lambda i, j, k, tbl_r: (i, j)),
        ),
        compiler_params=pltpu.CompilerParams(**params),
    )(tbl, x3, w, b)


# ---------------------------------------------------------------------------
# DebedderNeuron: parameter setup + fold + block-sparse table (glue, runs once)
# ---------------------------------------------------------------------------
class DebedderNeuronPallas:
    VMEM_SOFT_BUDGET = 20 * 1024 * 1024   # conservative across v5e/v6e/v7x

    def __init__(self, index_dict, d_model, key):
        self.index_dict = index_dict
        self.d_model = d_model
        self.slice_lst = get_kernel_slices(index_dict)
        self.num_tokens = sum(len(s) for s in self.slice_lst)
        self.i_dim_total = self.slice_lst[-1][-1][-1] + 1

        # per-layer nn.Linear(d_model, i_dim) parameters (deterministic init)
        self.Ws, self.bs = [], []
        for kernel_lst in self.slice_lst:
            i_dim = len(kernel_lst[0])
            for s in kernel_lst:
                assert len(s) == i_dim
            key, kw, kb = jax.random.split(key, 3)
            self.Ws.append(jax.random.normal(kw, (i_dim, d_model), jnp.float32) * 0.05)
            self.bs.append(jax.random.normal(kb, (i_dim,), jnp.float32) * 0.05)

        # ---- fold per-token linear + scatter-add + 0.5 scaling --------------
        N = self.i_dim_total
        K_flat = self.num_tokens * d_model
        self.K_flat = K_flat

        Wbig = np.zeros((self.num_tokens, d_model, N), np.float32)
        beff = np.zeros((N,), np.float32)
        t = 0
        for idx, kernel_slice_lst in enumerate(self.slice_lst):
            W = np.asarray(self.Ws[idx])            # (i_dim, d_model)
            b = np.asarray(self.bs[idx])            # (i_dim,)
            for kernel_index in kernel_slice_lst:
                ki = np.asarray(kernel_index, dtype=np.int64)
                tok = np.zeros((N, d_model), np.float32)
                np.add.at(tok, ki, W)               # duplicate-safe scatter-add
                Wbig[t] = tok.T                     # (d_model, N)
                np.add.at(beff, ki, b)
                t += 1
        if len(index_dict['idx_start']) > 2:
            s = index_dict['idx_start'][1]
            e = index_dict['idx_start'][-1]
            Wbig[:, :, s:e] *= 0.5
            beff[s:e] *= 0.5

        # ---- tile policy -----------------------------------------------------
        self.TK = 256 if K_flat <= 4096 else 512
        self.TN = 512 if N > 2048 else 256
        Np = _round_up(N, self.TN)
        if Np // self.TN < 2 and Np >= 256:   # keep >=2 parallel j blocks (v7x)
            self.TN = 128
            Np = _round_up(N, self.TN)
        Kp_base = _round_up(K_flat, self.TK)
        Kp_ext = Kp_base + self.TK            # + one reserved all-zero k block
        self.Np, self.Kp_ext = Np, Kp_ext
        self.nkb = Kp_base // self.TK
        self.nkb_ext = Kp_ext // self.TK
        self.njb = Np // self.TN

        # ---- dense folded weights, padded + bf16-cast ONCE -------------------
        # TODO(synk): optional W-stream quantization (int8 v5e/v6e, fp8 v7x)
        # with per-column-block scales would halve HBM traffic again.
        Wall = np.zeros((Kp_ext, Np), np.float32)
        Wall[:K_flat, :N] = Wbig.reshape(K_flat, N)

        # ---- block-sparsity table: nonzero k-blocks per output column block --
        zero_blk = self.nkb                   # reserved all-zero k block index
        nz_lists = []
        for jb in range(self.njb):
            cols = slice(jb * self.TN, (jb + 1) * self.TN)
            lst = [kb for kb in range(self.nkb)
                   if np.any(Wall[kb * self.TK:(kb + 1) * self.TK, cols])]
            nz_lists.append(lst if lst else [zero_blk])
        max_nnz = max(len(l) for l in nz_lists)
        tbl = np.full((self.njb, max_nnz), zero_blk, np.int32)
        for jb, lst in enumerate(nz_lists):
            tbl[jb, :len(lst)] = np.asarray(lst, np.int32)
        self.tbl = jnp.asarray(tbl)

        self.W_pad = jnp.asarray(Wall, dtype=jnp.bfloat16)
        b_pad = np.zeros((1, Np), np.float32)
        b_pad[0, :N] = beff
        self.b_pad = jnp.asarray(b_pad)

    # estimated VMEM working set (double-buffered streams) for a given TM
    def _vmem_estimate(self, tm):
        return (2 * self.nkb_ext * tm * self.TK * 2    # resident x slab (bf16)
                + 2 * self.TK * self.TN * 2            # W tile (bf16)
                + 2 * self.TN * 4                      # bias tile (f32)
                + 2 * tm * self.TN * 4)                # output block (f32)

    def __call__(self, x):
        # x: (B, T, D) -> pad/flatten, run block-sparse Pallas matmul.
        B, T, D = x.shape
        assert T == self.num_tokens and D == self.d_model
        K_flat = self.K_flat

        # TM policy: single i block for small batch (W streamed exactly once);
        # large TM for big batches so W is re-streamed as rarely as possible.
        tm0 = _round_up(max(B, 1), 16) if B <= 256 else 512
        candidates = [tm0] + [t for t in (256, 128, 64, 32, 16) if t < tm0]
        TM = candidates[-1]
        for t in candidates:
            if self._vmem_estimate(t) <= self.VMEM_SOFT_BUDGET:
                TM = t
                break
        Bp = _round_up(B, TM)

        vmem_limit = None
        est = self._vmem_estimate(TM)
        if est > 12 * 1024 * 1024:
            vmem_limit = min(2 * est, 48 * 1024 * 1024)

        # Single pad + layout plumbing (reshape/transpose of a tiny array):
        # x3[kb, b, :] = x_flat[b, kb*TK:(kb+1)*TK], zero-padded (incl. the
        # reserved all-zero k block used for table padding).
        x_flat = x.reshape(B, K_flat).astype(jnp.bfloat16)
        xp = jnp.pad(x_flat, ((0, Bp - B), (0, self.Kp_ext - K_flat)))
        x3 = xp.reshape(Bp, self.nkb_ext, self.TK).transpose(1, 0, 2)

        out = debedder_matmul(self.tbl, x3, self.W_pad, self.b_pad,
                              tm=TM, tn=self.TN, vmem_limit_bytes=vmem_limit)
        return out[:B, :self.i_dim_total]


# ---------------------------------------------------------------------------
# Pure-JAX reference (literal translation of the PyTorch forward loop, f32)
# ---------------------------------------------------------------------------
def reference_forward(x, slice_lst, Ws, bs, index_dict):
    i_dim_total = slice_lst[-1][-1][-1] + 1
    y = jnp.zeros((x.shape[0], i_dim_total), jnp.float32)
    embed_dx = 0
    for idx, kernel_slice_lst in enumerate(slice_lst):
        for kernel_index in kernel_slice_lst:
            y_tmp = x[:, embed_dx] @ Ws[idx].T + bs[idx]
            y = y.at[:, jnp.asarray(kernel_index)].add(y_tmp)
            embed_dx += 1
    if len(index_dict['idx_start']) > 2:
        s = index_dict['idx_start'][1]
        e = index_dict['idx_start'][-1]
        y = y.at[:, s:e].multiply(0.5)
    return y


# ---------------------------------------------------------------------------
if __name__ == "__main__":
    # Small 3-layer CNN layout described by index_dict (3x3 kernels):
    #   layer0: 1->4 channels  (36 w + 4 b  = 40 params, start   0)
    #   layer1: 4->4 channels  (144 w + 4 b = 148 params, start  40)
    #   layer2: 4->2 channels  (72 w + 2 b  = 74 params,  start 188)
    index_dict = {
        'layer':       [0, 1, 2],
        'idx_start':   [0, 40, 188],
        'kernel_size': [9, 9, 9],
        'channels_in': [1, 4, 4],
        'kernel_no':   [4, 4, 2],
    }
    d_model = 32
    batch = 2

    key = jax.random.PRNGKey(0)
    key, k_params, k_x = jax.random.split(key, 3)

    model = DebedderNeuronPallas(index_dict, d_model, k_params)
    x = jax.random.normal(k_x, (batch, model.num_tokens, d_model), jnp.float32)

    y_kernel = jax.block_until_ready(model(x))
    y_ref = jax.block_until_ready(
        reference_forward(x, model.slice_lst, model.Ws, model.bs, index_dict))

    assert y_kernel.shape == (batch, model.i_dim_total)
    # bf16 x/W on the MXU with f32 accumulation and f32 bias -> loose tolerance.
    np.testing.assert_allclose(np.asarray(y_kernel), np.asarray(y_ref),
                               rtol=2e-2, atol=2e-2)
    print("KERNEL_OK")
</pallas_src>

<mosaic_0001>
module attributes {stable_mosaic.version = 11 : i64} {
  func.func @_debedder_kernel(%arg0: i32, %arg1: i32, %arg2: i32, %arg3: memref<2x2xi32, #tpu.memory_space<smem>>, %arg4: memref<3x16x256xbf16, #tpu.memory_space<vmem>>, %arg5: memref<256x256xbf16, #tpu.memory_space<vmem>>, %arg6: memref<1x256xf32, #tpu.memory_space<vmem>>, %arg7: memref<16x256xf32, #tpu.memory_space<vmem>>) attributes {dimension_semantics = [#tpu.dimension_semantics<parallel>, #tpu.dimension_semantics<parallel>, #tpu.dimension_semantics<arbitrary>], iteration_bounds = array<i64: 1, 2, 2>, scalar_prefetch = 1 : i64, scratch_operands = 0 : i64, tpu.core_type = #tpu.core_type<tc>, window_params = [{transform_indices = @transform_0, window_bounds = array<i64: 3, 16, 256>}, {transform_indices = @transform_1, window_bounds = array<i64: 256, 256>}, {transform_indices = @transform_2, window_bounds = array<i64: 1, 256>}, {transform_indices = @transform_3, window_bounds = array<i64: 16, 256>}]} {
    %0 = arith.index_cast %arg1 : i32 to index
    %1 = arith.index_cast %arg2 : i32 to index
    %2 = memref.load %arg3[%0, %1] : memref<2x2xi32, #tpu.memory_space<smem>>
    %3 = arith.index_cast %2 : i32 to index
    %c0 = arith.constant 0 : index
    %c0_0 = arith.constant 0 : index
    %4 = vector.load %arg4[%3, %c0, %c0_0] : memref<3x16x256xbf16, #tpu.memory_space<vmem>>, vector<1x16x256xbf16>
    %5 = vector.shape_cast %4 : vector<1x16x256xbf16> to vector<16x256xbf16>
    %c0_1 = arith.constant 0 : index
    %c0_2 = arith.constant 0 : index
    %6 = vector.load %arg5[%c0_1, %c0_2] : memref<256x256xbf16, #tpu.memory_space<vmem>>, vector<256x256xbf16>
    %cst = arith.constant dense<0.000000e+00> : vector<16x256xf32>
    %7 = tpu.matmul %5, %6, %cst {dimension_numbers = #tpu.dot_dimension_numbers<[1], [0], [0], [1], [0, 0, 1, 1], [], []>} : vector<16x256xbf16>, vector<256x256xbf16>, vector<16x256xf32> -> vector<16x256xf32>
    %c0_i32 = arith.constant 0 : i32
    %8 = arith.cmpi eq, %arg2, %c0_i32 : i32
    %9 = arith.extui %8 : i1 to i32
    %c0_i32_3 = arith.constant 0 : i32
    %10 = arith.cmpi ne, %9, %c0_i32_3 : i32
    scf.if %10 {
      %c0_6 = arith.constant 0 : index
      %c0_7 = arith.constant 0 : index
      %14 = vector.load %arg6[%c0_6, %c0_7] : memref<1x256xf32, #tpu.memory_space<vmem>>, vector<1x256xf32>
      %15 = vector.broadcast %14 : vector<1x256xf32> to vector<16x256xf32>
      %16 = arith.addf %7, %15 : vector<16x256xf32>
      %c0_8 = arith.constant 0 : index
      %c0_9 = arith.constant 0 : index
      %17 = vector.load %arg7[%c0_8, %c0_9] : memref<16x256xf32, #tpu.memory_space<vmem>>, vector<16x256xf32>
      tpu.vector_store %arg7[%c0_8, %c0_9], %16 {strides = array<i32>} : memref<16x256xf32, #tpu.memory_space<vmem>>, vector<16x256xf32>,
    } else {
    }
    %c0_i32_4 = arith.constant 0 : i32
    %11 = arith.cmpi sgt, %arg2, %c0_i32_4 : i32
    %12 = arith.extui %11 : i1 to i32
    %c0_i32_5 = arith.constant 0 : i32
    %13 = arith.cmpi ne, %12, %c0_i32_5 : i32
    scf.if %13 {
      %c0_6 = arith.constant 0 : index
      %c0_7 = arith.constant 0 : index
      %14 = vector.load %arg7[%c0_6, %c0_7] : memref<16x256xf32, #tpu.memory_space<vmem>>, vector<16x256xf32>
      %15 = arith.addf %14, %7 : vector<16x256xf32>
      %c0_8 = arith.constant 0 : index
      %c0_9 = arith.constant 0 : index
      %16 = vector.load %arg7[%c0_8, %c0_9] : memref<16x256xf32, #tpu.memory_space<vmem>>, vector<16x256xf32>
      tpu.vector_store %arg7[%c0_8, %c0_9], %15 {strides = array<i32>} : memref<16x256xf32, #tpu.memory_space<vmem>>, vector<16x256xf32>,
    } else {
    }
    return
  }
  func.func @transform_0(%arg0: i32, %arg1: i32, %arg2: i32, %arg3: memref<2x2xi32, #tpu.memory_space<smem>>) -> (i32, i32, i32) {
    %c0_i32 = arith.constant 0 : i32
    %c0_i32_0 = arith.constant 0 : i32
    %c0_i32_1 = arith.constant 0 : i32
    return %c0_i32, %arg0, %c0_i32_0 : i32, i32, i32
  }
  func.func @transform_1(%arg0: i32, %arg1: i32, %arg2: i32, %arg3: memref<2x2xi32, #tpu.memory_space<smem>>) -> (i32, i32) {
    %0 = arith.index_cast %arg1 : i32 to index
    %1 = arith.index_cast %arg2 : i32 to index
    %2 = memref.load %arg3[%0, %1] : memref<2x2xi32, #tpu.memory_space<smem>>
    %c0_i32 = arith.constant 0 : i32
    return %2, %arg1 : i32, i32
  }
  func.func @transform_2(%arg0: i32, %arg1: i32, %arg2: i32, %arg3: memref<2x2xi32, #tpu.memory_space<smem>>) -> (i32, i32) {
    %c0_i32 = arith.constant 0 : i32
    %c0_i32_0 = arith.constant 0 : i32
    return %c0_i32, %arg1 : i32, i32
  }
  func.func @transform_3(%arg0: i32, %arg1: i32, %arg2: i32, %arg3: memref<2x2xi32, #tpu.memory_space<smem>>) -> (i32, i32) {
    %c0_i32 = arith.constant 0 : i32
    return %arg0, %arg1 : i32, i32
  }
}

</mosaic_0001>

<llo_original>
// kernel: tpu_custom_call.1
$region0: #{tpu_custom_call.1}
  #allocation0 [shape = 'u32[]', space=smem, size = 0x4, offset = 0x4, fixed_abs, tag = 'smem constant byte address 0x4 - core index']
  #allocation1 [shape = 'u32[144,128]{1,0:T(1,128)}', space=vmem, size = 0x12000, scoped, tag = 'internal scratch']
  #allocation2 [shape = 's32[1]{0}', space=sflag, size = 0x4, scoped, tag = 'scoped memory for tpu_custom_call.1']
  #allocation3 [shape = 'u8[1024]{0}', space=smem, size = 0x400, scoped, tag = 'prefetched SMEM operand 0']
  %s0 = inlined_call_operand.hbm [shape: s32[2,2], index: 0, kind: input, shape index: {}]
  %s1 = inlined_call_operand.hbm [shape: bf16[3,16,256], index: 1, kind: input, shape index: {}]
  %s2 = inlined_call_operand.hbm [shape: bf16[768,512], index: 2, kind: input, shape index: {}]
  %s3 = inlined_call_operand.vmem [shape: f32[1,512], index: 3, kind: input, shape index: {}]
  %s4 = inlined_call_operand.hbm [shape: f32[16,512], index: 4, kind: output, shape index: {}]
  %s5 = sld [smem:[#allocation0]]
  $region61: #{tpu_custom_call.1} parent=0
    _
  %s7 = ssub.s32 1, %s5
  %s8 = scalar_select 0, %s7, %s5
  %10 = dma.hbm_to_smem %s0, 32, [#allocation3], [#allocation2]
  %11 = dma.done [#allocation2], 32
  %12 = sfence
  $region1: #{tpu_custom_call.1} parent=0
    #allocation4 [shape = 'u8[24576]{0}', space=vmem, size = 0x6000, scoped, tag = 'input window, operand 1, single buffered']
    #allocation5 [shape = 's32[2]{0}', space=sflag, size = 0x8, scoped, tag = 'scoped memory for tpu_custom_call.1']
    #allocation6 [shape = 's32[2]{0}', space=sflag, size = 0x8, scoped, tag = 'scoped memory for tpu_custom_call.1']
    #allocation7 [shape = 'u8[262144]{0}', space=vmem, size = 0x40000, scoped, tag = 'input window, operand 2']
    #allocation8 [shape = 's32[2]{0}', space=sflag, size = 0x8, scoped, tag = 'scoped memory for tpu_custom_call.1']
    #allocation9 [shape = 'u8[32768]{0}', space=vmem, size = 0x8000, scoped, tag = 'output window, operand 0']
    %13 = vsyncpa [#allocation5], 0
    %14 = vsyncpa [#allocation8], 0
    %s15 = scalar_lea.sflag [#allocation8], 1
    %16 = vsyncpa %s15, 0
    %17 = vsyncpa [#allocation6], 0
    %s18 = scalar_lea.sflag [#allocation6], 1
    %19 = vsyncpa %s18, 0
    loop: start=0, step=1, limit=6
    $region2: #{tpu_custom_call.1} parent=1 // loop_pre_header
      _
    $region3: #{tpu_custom_call.1} parent=1 // loop_header
      %s21 = sphi 0, %s25
      %p22 = scmp.ge.s32.totalorder %s21, 6
      %s28 = sphi 0, %s47
      %s29 = sphi 0, %s43
      %s30 = sphi 0, %s39
      %s31 = sphi 0, %s28
      %s32 = sphi 0, %s29
      %s33 = sphi 0, %s30
      %s34 = sphi 0, %s31
      %s35 = sphi 0, %s32
      %s36 = sphi 0, %s33
      %s50 = sphi 0, %s52
      %s53 = sphi 0, %s50
      %s54 = sphi 0, %s53
      %s70 = sphi 0, %s54
      %s94 = sphi 0, %s96
      %s97 = sphi 0, %s94
      %s98 = sphi 0, %s97
      %s114 = sphi 0, %s98
      %s120 = sphi 0, %s122
      %s123 = sphi 0, %s120
      %s124 = sphi 0, %s123
      %s140 = sphi 0, %s124
      %s148 = sphi 0, %s150
      %s151 = sphi 0, %s148
      %s152 = sphi 0, %s151
      %s168 = sphi 0, %s152
    $region4: #{tpu_custom_call.1} parent=1 // loop_header_branch
      %24 = sbr.rel (%p22) target = $region8
    $region5: #{tpu_custom_call.1} parent=1 // loop_body
      %s26 = ssub.s32 %s21, 1
      %s27 = ssub.s32 %s21, 2
      %s37 = sadd.s32 1, %s30
      %p38 = scmp.ge.s32.totalorder %s37, 2
      %s39 = scalar_select %p38, 0, %s37
      %s40 = sadd.s32 1, %s29
      %s41 = scalar_select %p38, %s40, %s29
      %p42 = scmp.ge.s32.totalorder %s41, 2
      %s43 = scalar_select %p42, 0, %s41
      %s44 = sadd.s32 1, %s28
      %s45 = scalar_select %p42, %s44, %s28
      %p46 = scmp.ge.s32.totalorder %s45, 1
      %s47 = scalar_select %p46, 0, %s45
      %s48 = ssub.s32 %s28, %s47
      %p49 = scmp.eq.s32.totalorder %s48, 0
      %s51 = sadd.s32 %s50, 1
      %s52 = scalar_select %p49, %s50, %s51
      %p55 = pneg %p49
      %p56 = scmp.eq.s32.totalorder %s21, 3
      %p57 = por %p55, %p56
      %p58 = scmp.ne.s32.totalorder %s50, %s53
      %p59 = scmp.eq.s32.totalorder %s21, 0
      %p60 = por %p58, %p59
      %p61 = scmp.ne.s32.totalorder %s50, %s53
      %p62 = scmp.eq.s32.totalorder %s26, 3
      %p63 = por %p61, %p62
      %p64 = scmp.ne.s32.totalorder %s53, %s54
      %p65 = scmp.eq.s32.totalorder %s26, 0
      %p66 = por %p64, %p65
      %p67 = scmp.ne.s32.totalorder %s53, %s54
      %p68 = scmp.eq.s32.totalorder %s27, 3
      %p69 = por %p67, %p68
      %p71 = scmp.ne.s32.totalorder %s54, %s70
      %p72 = scmp.eq.s32.totalorder %s27, 0
      %p73 = por %p71, %p72
      %s74 = sshra.s32 %s30, 7
      %s75 = sand.u32 %s30, 127
      %s76 = sadd.s32 %s74, %s29
      %s77 = smul.u32 %s76, 128
      %s78 = sshra.s32 %s30, 7
      %s79 = sand.u32 %s30, 127
      %s80 = sadd.s32 %s77, %s79
      %s81 = sld [smem:[#allocation3 + %s80]]
      %s82 = sshra.s32 %s39, 7
      %s83 = sand.u32 %s39, 127
      %s84 = sadd.s32 %s82, %s43
      %s85 = smul.u32 %s84, 128
      %s86 = sshra.s32 %s39, 7
      %s87 = sand.u32 %s39, 127
      %s88 = sadd.s32 %s85, %s87
      %s89 = sld [smem:[#allocation3 + %s88]]
      %s90 = ssub.s32 %s81, %s89
      %s91 = ssub.s32 %s29, %s43
      %s92 = sor.u32 %s90, %s91
      %p93 = scmp.eq.s32.totalorder %s92, 0
      %s95 = sadd.s32 %s94, 1
      %s96 = scalar_select %p93, %s94, %s95
      %p99 = pneg %p93
      %p100 = scmp.eq.s32.totalorder %s21, 3
      %p101 = por %p99, %p100
      %p102 = scmp.ne.s32.totalorder %s94, %s97
      %p103 = scmp.eq.s32.totalorder %s21, 0
      %p104 = por %p102, %p103
      %p105 = scmp.ne.s32.totalorder %s94, %s97
      %p106 = scmp.eq.s32.totalorder %s26, 3
      %p107 = por %p105, %p106
      %p108 = scmp.ne.s32.totalorder %s97, %s98
      %p109 = scmp.eq.s32.totalorder %s26, 0
      %p110 = por %p108, %p109
      %p111 = scmp.ne.s32.totalorder %s97, %s98
      %p112 = scmp.eq.s32.totalorder %s27, 3
      %p113 = por %p111, %p112
      %p115 = scmp.ne.s32.totalorder %s98, %s114
      %p116 = scmp.eq.s32.totalorder %s27, 0
      %p117 = por %p115, %p116
      %s118 = ssub.s32 %s29, %s43
      %p119 = scmp.eq.s32.totalorder %s118, 0
      %s121 = sadd.s32 %s120, 1
      %s122 = scalar_select %p119, %s120, %s121
      %p125 = pneg %p119
      %p126 = scmp.eq.s32.totalorder %s21, 3
      %p127 = por %p125, %p126
      %p128 = scmp.ne.s32.totalorder %s120, %s123
      %p129 = scmp.eq.s32.totalorder %s21, 0
      %p130 = por %p128, %p129
      %p131 = scmp.ne.s32.totalorder %s120, %s123
      %p132 = scmp.eq.s32.totalorder %s26, 3
      %p133 = por %p131, %p132
      %p134 = scmp.ne.s32.totalorder %s123, %s124
      %p135 = scmp.eq.s32.totalorder %s26, 0
      %p136 = por %p134, %p135
      %p137 = scmp.ne.s32.totalorder %s123, %s124
      %p138 = scmp.eq.s32.totalorder %s27, 3
      %p139 = por %p137, %p138
      %p141 = scmp.ne.s32.totalorder %s124, %s140
      %p142 = scmp.eq.s32.totalorder %s27, 0
      %p143 = por %p141, %p142
      %s144 = ssub.s32 %s28, %s47
      %s145 = ssub.s32 %s29, %s43
      %s146 = sor.u32 %s144, %s145
      %p147 = scmp.eq.s32.totalorder %s146, 0
      %s149 = sadd.s32 %s148, 1
      %s150 = scalar_select %p147, %s148, %s149
      %p153 = pneg %p147
      %p154 = scmp.eq.s32.totalorder %s21, 3
      %p155 = por %p153, %p154
      %p156 = scmp.ne.s32.totalorder %s148, %s151
      %p157 = scmp.eq.s32.totalorder %s21, 0
      %p158 = por %p156, %p157
      %p159 = scmp.ne.s32.totalorder %s148, %s151
      %p160 = scmp.eq.s32.totalorder %s26, 3
      %p161 = por %p159, %p160
      %p162 = scmp.ne.s32.totalorder %s151, %s152
      %p163 = scmp.eq.s32.totalorder %s26, 0
      %p164 = por %p162, %p163
      %p165 = scmp.ne.s32.totalorder %s151, %s152
      %p166 = scmp.eq.s32.totalorder %s27, 3
      %p167 = por %p165, %p166
      %p169 = scmp.ne.s32.totalorder %s152, %s168
      %p170 = scmp.eq.s32.totalorder %s27, 0
      %p171 = por %p169, %p170
      %p172 = scmp.le.s32.totalorder 1, %s21
      %p173 = scmp.lt.s32.totalorder %s21, 5
      %p174 = pnand %p172, %p173
      %p175 = pneg %p174
      // Predicated region
      $region9: #{tpu_custom_call.1} parent=5 // pred_check
        _
      $region10: #{tpu_custom_call.1} parent=5 // pred_check_branch
        %177 = sbr.rel (%p174) target = $region12
      $region11: #{tpu_custom_call.1} parent=5 // pred_region
        %s178 = ssub.s32 %s21, 1
        // Predicated region
        $region13: #{tpu_custom_call.1} parent=11 // pred_check
          %p179 = pneg %p66
        $region14: #{tpu_custom_call.1} parent=11 // pred_check_branch
          %181 = sbr.rel (%p179) target = $region16
        $region15: #{tpu_custom_call.1} parent=11 // pred_region
          %s182 = smul.u32 2, %s31
          %s184 = ssub.s32 768, 768
          %185 = vsyncadd [#allocation5], %s184
          %s186 = smul.addr %s182, 2
          %s187 = smul.addr %s186, 64
          %s188 = scalar_lea.hbm %s1, %s187
          %s189 = sshll.u32 [#allocation4], 4
          %s190 = int_to_ptr.vmem [resolvable:$true] %s189
          %195 = dma.hbm_to_vmem [thread:$0]  %s188, 768, %s190, [#allocation5], 128, 128, 8
        $region16: #{tpu_custom_call.1} parent=11 // pred_fallthru
          _
      $region12: #{tpu_custom_call.1} parent=5 // pred_fallthru
        _
      %p196 = scmp.lt.s32.totalorder %s21, 4
      // Predicated region
      $region17: #{tpu_custom_call.1} parent=5 // pred_check
        %p197 = pneg %p196
      $region18: #{tpu_custom_call.1} parent=5 // pred_check_branch
        %199 = sbr.rel (%p197) target = $region20
      $region19: #{tpu_custom_call.1} parent=5 // pred_region
        // Predicated region
        $region21: #{tpu_custom_call.1} parent=19 // pred_check
          %p200 = pneg %p104
        $region22: #{tpu_custom_call.1} parent=19 // pred_check_branch
          %202 = sbr.rel (%p200) target = $region24
        $region23: #{tpu_custom_call.1} parent=19 // pred_region
          %s203 = sand.u32 %s94, 1
          %s204 = scalar_lea.sflag [#allocation8], %s203
          %s205 = sand.u32 %s94, 1
          %s206 = smul.addr %s205, 256
          %s207 = scalar_lea.vmem [#allocation7], %s206
          %s208 = sshra.s32 %s30, 7
          %s209 = sand.u32 %s30, 127
          %s210 = sadd.s32 %s208, %s29
          %s211 = smul.u32 %s210, 128
          %s212 = sshra.s32 %s30, 7
          %s213 = sand.u32 %s30, 127
          %s214 = sadd.s32 %s211, %s213
          %s215 = sld [smem:[#allocation3 + %s214]]
          %s216 = smul.u32 32, %s215
          %s217 = smul.u32 2, %s29
          %s219 = ssub.s32 4096, 4096
          %220 = vsyncadd %s204, %s219
          %s221 = smul.addr %s216, 4
          %s222 = sadd.s32 %s217, %s221
          %s223 = smul.addr %s222, 64
          %s224 = scalar_lea.hbm %s2, %s223
          %s225 = sshll.u32 %s207, 4
          %s226 = int_to_ptr.vmem [resolvable:$true] %s225
          %231 = dma.hbm_to_vmem [thread:$0]  %s224, 4096, %s226, %s204, 256, 128, 8
        $region24: #{tpu_custom_call.1} parent=19 // pred_fallthru
          _
        // Predicated region
        $region25: #{tpu_custom_call.1} parent=19 // pred_check
          %p232 = pneg %p130
        $region26: #{tpu_custom_call.1} parent=19 // pred_check_branch
          %234 = sbr.rel (%p232) target = $region28
        $region27: #{tpu_custom_call.1} parent=19 // pred_region
          %s235 = smul.u32 2, %s29
          %p236 = scmp.lt.s32.totalorder %s235, 3
          %s237 = scalar_select %p236, %s235, 3
          %s238 = scalar_lea.vmem %s3, %s237
          %s239 = smul.u32 2, %s29
        $region28: #{tpu_custom_call.1} parent=19 // pred_fallthru
          _
      $region20: #{tpu_custom_call.1} parent=5 // pred_fallthru
        _
      %p240 = scmp.le.s32.totalorder 1, %s21
      %p241 = scmp.lt.s32.totalorder %s21, 5
      %p242 = pnand %p240, %p241
      %p243 = pneg %p242
      // Predicated region
      $region29: #{tpu_custom_call.1} parent=5 // pred_check
        _
      $region30: #{tpu_custom_call.1} parent=5 // pred_check_branch
        %245 = sbr.rel (%p242) target = $region32
      $region31: #{tpu_custom_call.1} parent=5 // pred_region
        %s246 = ssub.s32 %s21, 1
        // Predicated region
        $region33: #{tpu_custom_call.1} parent=31 // pred_check
          %p247 = pneg %p66
        $region34: #{tpu_custom_call.1} parent=31 // pred_check_branch
          %249 = sbr.rel (%p247) target = $region36
        $region35: #{tpu_custom_call.1} parent=31 // pred_region
          %250 = dma.done [#allocation5], 768
        $region36: #{tpu_custom_call.1} parent=31 // pred_fallthru
          _
        %s251 = sand.u32 %s97, 1
        %s252 = scalar_lea.sflag [#allocation8], %s251
        %s253 = sand.u32 %s97, 1
        %s254 = smul.addr %s253, 256
        %s255 = scalar_lea.vmem [#allocation7], %s254
        // Predicated region
        $region37: #{tpu_custom_call.1} parent=31 // pred_check
          %p256 = pneg %p110
        $region38: #{tpu_custom_call.1} parent=31 // pred_check_branch
          %258 = sbr.rel (%p256) target = $region40
        $region39: #{tpu_custom_call.1} parent=31 // pred_region
          %259 = dma.done %s252, 4096
        $region40: #{tpu_custom_call.1} parent=31 // pred_fallthru
          _
        %p260 = pneg %p66
        %p261 = pneg %p63
        %s262 = sand.u32 %s97, 1
        %s263 = scalar_lea.sflag [#allocation8], %s262
        %s264 = sand.u32 %s97, 1
        %s265 = smul.addr %s264, 256
        %s266 = scalar_lea.vmem [#allocation7], %s265
        %p267 = pneg %p110
        %p268 = pneg %p107
        %s269 = smul.u32 2, %s32
        %p270 = scmp.lt.s32.totalorder %s269, 3
        %s271 = scalar_select %p270, %s269, 3
        %s272 = scalar_lea.vmem %s3, %s271
        %p273 = pneg %p136
        %p274 = pneg %p133
        %p275 = pneg %p164
        %p276 = pneg %p161
        %s277 = sand.u32 %s151, 1
        %s278 = scalar_lea.sflag [#allocation6], %s277
        %s279 = sand.u32 %s151, 1
        %s280 = smul.addr %s279, 32
        %s281 = scalar_lea.vmem [#allocation9], %s280
        %s282 = smul.u32 2, %s31
        %s283 = sshra.s32 %s33, 7
        %s284 = sand.u32 %s33, 127
        %s285 = sadd.s32 %s283, %s32
        %s286 = smul.u32 %s285, 128
        %s287 = sshra.s32 %s33, 7
        %s288 = sand.u32 %s33, 127
        %s289 = sadd.s32 %s286, %s288
        %s290 = sld [smem:[#allocation3 + %s289]]
        %s291 = smul.u32 32, %s290
        %s292 = smul.u32 2, %s32
        %s293 = smul.u32 2, %s32
        %p294 = scmp.lt.s32.totalorder %s293, 3
        %s295 = scalar_select %p294, %s293, 3
        %s296 = scalar_lea.vmem %s3, %s295
        %s297 = smul.u32 2, %s32
        %s298 = smul.u32 2, %s31
        %s299 = smul.u32 2, %s32
        %s300 = sshra.s32 %s33, 7
        %s301 = sand.u32 %s33, 127
        %s302 = sadd.s32 %s300, %s32
        %s303 = smul.u32 %s302, 128
        %s304 = sshra.s32 %s33, 7
        %s305 = sand.u32 %s33, 127
        %s306 = sadd.s32 %s303, %s305
        %s307 = sld [smem:[#allocation3 + %s306]]
        %s308 = smul.u32 %s307, 4
        %s309 = smul.addr %s308, 4
        %s310 = scalar_lea.vmem [#allocation4], %s309
        %v311 = vld [vmem:[%s310] sm:$0xff]
        %v312 = vld [vmem:[%s310 + $0x8] sm:$0xff]
        %v313 = vld [vmem:[%s255] sm:$0xff]
        %v314 = vld [vmem:[%s255 + $0x8] sm:$0xff]
        %v315 = vld [vmem:[%s255 + $0x10] sm:$0xff]
        %v316 = vld [vmem:[%s255 + $0x18] sm:$0xff]
        %v317 = vld [vmem:[%s255 + $0x20] sm:$0xff]
        %v318 = vld [vmem:[%s255 + $0x28] sm:$0xff]
        %v319 = vld [vmem:[%s255 + $0x30] sm:$0xff]
        %v320 = vld [vmem:[%s255 + $0x38] sm:$0xff]
        %v321 = vld [vmem:[%s255 + $0x40] sm:$0xff]
        %v322 = vld [vmem:[%s255 + $0x48] sm:$0xff]
        %v323 = vld [vmem:[%s255 + $0x50] sm:$0xff]
        %v324 = vld [vmem:[%s255 + $0x58] sm:$0xff]
        %v325 = vld [vmem:[%s255 + $0x60] sm:$0xff]
        %v326 = vld [vmem:[%s255 + $0x68] sm:$0xff]
        %v327 = vld [vmem:[%s255 + $0x70] sm:$0xff]
        %v328 = vld [vmem:[%s255 + $0x78] sm:$0xff]
        %v329 = vld [vmem:[%s255 + $0x80] sm:$0xff]
        %v330 = vld [vmem:[%s255 + $0x88] sm:$0xff]
        %v331 = vld [vmem:[%s255 + $0x90] sm:$0xff]
        %v332 = vld [vmem:[%s255 + $0x98] sm:$0xff]
        %v333 = vld [vmem:[%s255 + $0xa0] sm:$0xff]
        %v334 = vld [vmem:[%s255 + $0xa8] sm:$0xff]
        %v335 = vld [vmem:[%s255 + $0xb0] sm:$0xff]
        %v336 = vld [vmem:[%s255 + $0xb8] sm:$0xff]
        %v337 = vld [vmem:[%s255 + $0xc0] sm:$0xff]
        %v338 = vld [vmem:[%s255 + $0xc8] sm:$0xff]
        %v339 = vld [vmem:[%s255 + $0xd0] sm:$0xff]
        %v340 = vld [vmem:[%s255 + $0xd8] sm:$0xff]
        %v341 = vld [vmem:[%s255 + $0xe0] sm:$0xff]
        %v342 = vld [vmem:[%s255 + $0xe8] sm:$0xff]
        %v343 = vld [vmem:[%s255 + $0xf0] sm:$0xff]
        %v344 = vld [vmem:[%s255 + $0xf8] sm:$0xff]
        %v347 = vunpack.c.l.b16 %v311
        %v348 = vunpack.c.h.b16 %v311
        %v349 = vunpack.c.l.b16 %v312
        %v350 = vunpack.c.h.b16 %v312
        %v351 = vpack.c.b16 %v349, %v347
        %v352 = vpack.c.b16 %v350, %v348
        %v387 = vunpack.c.l.b16 %v313
        %v388 = vunpack.c.h.b16 %v313
        %v389 = vunpack.c.l.b16 %v314
        %v390 = vunpack.c.h.b16 %v314
        %v391 = vunpack.c.l.b16 %v315
        %v392 = vunpack.c.h.b16 %v315
        %v393 = vunpack.c.l.b16 %v316
        %v394 = vunpack.c.h.b16 %v316
        %v395 = vunpack.c.l.b16 %v317
        %v396 = vunpack.c.h.b16 %v317
        %v397 = vunpack.c.l.b16 %v318
        %v398 = vunpack.c.h.b16 %v318
        %v399 = vunpack.c.l.b16 %v319
        %v400 = vunpack.c.h.b16 %v319
        %v401 = vunpack.c.l.b16 %v320
        %v402 = vunpack.c.h.b16 %v320
        %v403 = vunpack.c.l.b16 %v321
        %v404 = vunpack.c.h.b16 %v321
        %v405 = vunpack.c.l.b16 %v322
        %v406 = vunpack.c.h.b16 %v322
        %v407 = vunpack.c.l.b16 %v323
        %v408 = vunpack.c.h.b16 %v323
        %v409 = vunpack.c.l.b16 %v324
        %v410 = vunpack.c.h.b16 %v324
        %v411 = vunpack.c.l.b16 %v325
        %v412 = vunpack.c.h.b16 %v325
        %v413 = vunpack.c.l.b16 %v326
        %v414 = vunpack.c.h.b16 %v326
        %v415 = vunpack.c.l.b16 %v327
        %v416 = vunpack.c.h.b16 %v327
        %v417 = vunpack.c.l.b16 %v328
        %v418 = vunpack.c.h.b16 %v328
        %v419 = vunpack.c.l.b16 %v329
        %v420 = vunpack.c.h.b16 %v329
        %v421 = vunpack.c.l.b16 %v330
        %v422 = vunpack.c.h.b16 %v330
        %v423 = vunpack.c.l.b16 %v331
        %v424 = vunpack.c.h.b16 %v331
        %v425 = vunpack.c.l.b16 %v332
        %v426 = vunpack.c.h.b16 %v332
        %v427 = vunpack.c.l.b16 %v333
        %v428 = vunpack.c.h.b16 %v333
        %v429 = vunpack.c.l.b16 %v334
        %v430 = vunpack.c.h.b16 %v334
        %v431 = vunpack.c.l.b16 %v335
        %v432 = vunpack.c.h.b16 %v335
        %v433 = vunpack.c.l.b16 %v336
        %v434 = vunpack.c.h.b16 %v336
        %v435 = vunpack.c.l.b16 %v337
        %v436 = vunpack.c.h.b16 %v337
        %v437 = vunpack.c.l.b16 %v338
        %v438 = vunpack.c.h.b16 %v338
        %v439 = vunpack.c.l.b16 %v339
        %v440 = vunpack.c.h.b16 %v339
        %v441 = vunpack.c.l.b16 %v340
        %v442 = vunpack.c.h.b16 %v340
        %v443 = vunpack.c.l.b16 %v341
        %v444 = vunpack.c.h.b16 %v341
        %v445 = vunpack.c.l.b16 %v342
        %v446 = vunpack.c.h.b16 %v342
        %v447 = vunpack.c.l.b16 %v343
        %v448 = vunpack.c.h.b16 %v343
        %v449 = vunpack.c.l.b16 %v344
        %v450 = vunpack.c.h.b16 %v344
        %v451 = vpack.c.b16 %v389, %v387
        %v452 = vpack.c.b16 %v390, %v388
        %v453 = vpack.c.b16 %v393, %v391
        %v454 = vpack.c.b16 %v394, %v392
        %v455 = vpack.c.b16 %v397, %v395
        %v456 = vpack.c.b16 %v398, %v396
        %v457 = vpack.c.b16 %v401, %v399
        %v458 = vpack.c.b16 %v402, %v400
        %v459 = vpack.c.b16 %v405, %v403
        %v460 = vpack.c.b16 %v406, %v404
        %v461 = vpack.c.b16 %v409, %v407
        %v462 = vpack.c.b16 %v410, %v408
        %v463 = vpack.c.b16 %v413, %v411
        %v464 = vpack.c.b16 %v414, %v412
        %v465 = vpack.c.b16 %v417, %v415
        %v466 = vpack.c.b16 %v418, %v416
        %v467 = vpack.c.b16 %v421, %v419
        %v468 = vpack.c.b16 %v422, %v420
        %v469 = vpack.c.b16 %v425, %v423
        %v470 = vpack.c.b16 %v426, %v424
        %v471 = vpack.c.b16 %v429, %v427
        %v472 = vpack.c.b16 %v430, %v428
        %v473 = vpack.c.b16 %v433, %v431
        %v474 = vpack.c.b16 %v434, %v432
        %v475 = vpack.c.b16 %v437, %v435
        %v476 = vpack.c.b16 %v438, %v436
        %v477 = vpack.c.b16 %v441, %v439
        %v478 = vpack.c.b16 %v442, %v440
        %v479 = vpack.c.b16 %v445, %v443
        %v480 = vpack.c.b16 %v446, %v444
        %v481 = vpack.c.b16 %v449, %v447
        %v482 = vpack.c.b16 %v450, %v448
        %515 = vmatprep.subr.bf16.mxu0 %v452
        %516 = vmatpush1.bf16.msra.mxu0 %v451
        %517 = vmatprep.subr.bf16.mxu0 %v454
        %518 = vmatpush1.bf16.msra.mxu0 %v453
        %519 = vmatprep.subr.bf16.mxu0 %v456
        %520 = vmatpush1.bf16.msra.mxu0 %v455
        %521 = vmatprep.subr.bf16.mxu0 %v458
        %522 = vmatpush1.bf16.msra.mxu0 %v457
        %523 = vmatprep.subr.bf16.mxu0 %v460
        %524 = vmatpush1.bf16.msra.mxu0 %v459
        %525 = vmatprep.subr.bf16.mxu0 %v462
        %526 = vmatpush1.bf16.msra.mxu0 %v461
        %527 = vmatprep.subr.bf16.mxu0 %v464
        %528 = vmatpush1.bf16.msra.mxu0 %v463
        %529 = vmatprep.subr.bf16.mxu0 %v466
        %530 = vmatpush1.bf16.msra.mxu0 %v465
        %531 = vmatprep.subr.bf16.mxu0 %v468
        %532 = vmatpush1.bf16.msra.mxu0 %v467
        %533 = vmatprep.subr.bf16.mxu0 %v470
        %534 = vmatpush1.bf16.msra.mxu0 %v469
        %535 = vmatprep.subr.bf16.mxu0 %v472
        %536 = vmatpush1.bf16.msra.mxu0 %v471
        %537 = vmatprep.subr.bf16.mxu0 %v474
        %538 = vmatpush1.bf16.msra.mxu0 %v473
        %539 = vmatprep.subr.bf16.mxu0 %v476
        %540 = vmatpush1.bf16.msra.mxu0 %v475
        %541 = vmatprep.subr.bf16.mxu0 %v478
        %542 = vmatpush1.bf16.msra.mxu0 %v477
        %543 = vmatprep.subr.bf16.mxu0 %v480
        %544 = vmatpush1.bf16.msra.mxu0 %v479
        %545 = vmatprep.subr.bf16.mxu0 %v482
        %546 = vmatpush1.bf16.msra.mxu0 %v481
        %547 = vmatprep.mubr.bf16.mxu0 %v352
        %548 = vmatmul.mubr.bf16.gmra.mrb[0].mxu0 %v351
        %v549 = vpop.f32.mrb[0].mxu0
        %v550 = vadd.f32 0.0, %v549
        %v551 = vpop.f32.mrb[0].mxu0
        %v552 = vadd.f32 0.0, %v551
        %v553 = vpop.f32.mrb[0].mxu0
        %v554 = vadd.f32 0.0, %v553
        %v555 = vpop.f32.mrb[0].mxu0
        %v556 = vadd.f32 0.0, %v555
        %557 = vdwg.mxu0
        %p558 = scmp.eq.s32.totalorder %s33, 0
        // Predicated region
        $region41: #{tpu_custom_call.1} parent=31 // pred_check
          %p559 = pneg %p558
        $region42: #{tpu_custom_call.1} parent=31 // pred_check_branch
          %561 = sbr.rel (%p559) target = $region44
        $region43: #{tpu_custom_call.1} parent=31 // pred_region
          %v562 = vld [vmem:[%s296] sm:$0x3]
          %v564 = vlaneseq
          %v565 = vshrl.u32 %v564, 7
          %v566 = vsub.s32 0, %v565
          %v567 = vrot.slane %v562, %v566
          %v568 = vlaneseq
          %v569 = vshrl.u32 %v568, 7
          %v570 = vsub.s32 1, %v569
          %v571 = vrot.slane %v562, %v570
          %v574 = vadd.f32 %v550, %v567
          %v575 = vadd.f32 %v552, %v571
          %v576 = vadd.f32 %v554, %v567
          %v577 = vadd.f32 %v556, %v571
          %578 = vst [vmem:[%s281] sm:$0xff] %v574
          %579 = vst [vmem:[%s281 + $0x8] sm:$0xff] %v575
          %580 = vst [vmem:[%s281 + $0x10] sm:$0xff] %v576
          %581 = vst [vmem:[%s281 + $0x18] sm:$0xff] %v577
        $region44: #{tpu_custom_call.1} parent=31 // pred_fallthru
          _
        %p582 = scmp.gt.s32.totalorder %s33, 0
        // Predicated region
        $region45: #{tpu_custom_call.1} parent=31 // pred_check
          %p583 = pneg %p582
        $region46: #{tpu_custom_call.1} parent=31 // pred_check_branch
          %585 = sbr.rel (%p583) target = $region48
        $region47: #{tpu_custom_call.1} parent=31 // pred_region
          %v586 = vld [vmem:[%s281] sm:$0xff]
          %v587 = vld [vmem:[%s281 + $0x8] sm:$0xff]
          %v588 = vld [vmem:[%s281 + $0x10] sm:$0xff]
          %v589 = vld [vmem:[%s281 + $0x18] sm:$0xff]
          %v590 = vadd.f32 %v586, %v550
          %v591 = vadd.f32 %v587, %v552
          %v592 = vadd.f32 %v588, %v554
          %v593 = vadd.f32 %v589, %v556
          %594 = vst [vmem:[%s281] sm:$0xff] %v590
          %595 = vst [vmem:[%s281 + $0x8] sm:$0xff] %v591
          %596 = vst [vmem:[%s281 + $0x10] sm:$0xff] %v592
          %597 = vst [vmem:[%s281 + $0x18] sm:$0xff] %v593
        $region48: #{tpu_custom_call.1} parent=31 // pred_fallthru
          _
        %s598 = sand.u32 %s151, 1
        %s599 = scalar_lea.sflag [#allocation6], %s598
        %s600 = sand.u32 %s151, 1
        %s601 = smul.addr %s600, 32
        %s602 = scalar_lea.vmem [#allocation9], %s601
        // Predicated region
        $region49: #{tpu_custom_call.1} parent=31 // pred_check
          %p603 = pneg %p161
        $region50: #{tpu_custom_call.1} parent=31 // pred_check_branch
          %605 = sbr.rel (%p603) target = $region52
        $region51: #{tpu_custom_call.1} parent=31 // pred_region
          %s606 = smul.u32 2, %s31
          %s607 = smul.u32 2, %s32
          %s609 = ssub.s32 512, 512
          %610 = vsyncadd %s599, %s609
          %s611 = smul.addr %s606, 4
          %s612 = sadd.s32 %s607, %s611
          %s613 = smul.addr %s612, 128
          %s614 = scalar_lea.hbm %s4, %s613
          %s615 = sshll.u32 %s602, 4
          %s616 = int_to_ptr.vmem [resolvable:$true] %s615
          %621 = dma.vmem_to_hbm [thread:$0]  %s616, 512, %s614, %s599, 256, 512, 16
        $region52: #{tpu_custom_call.1} parent=31 // pred_fallthru
          _
      $region32: #{tpu_custom_call.1} parent=5 // pred_fallthru
        _
      %p622 = scmp.le.s32.totalorder 2, %s21
      // Predicated region
      $region53: #{tpu_custom_call.1} parent=5 // pred_check
        %p623 = pneg %p622
      $region54: #{tpu_custom_call.1} parent=5 // pred_check_branch
        %625 = sbr.rel (%p623) target = $region56
      $region55: #{tpu_custom_call.1} parent=5 // pred_region
        %s626 = ssub.s32 %s21, 2
        // Predicated region
        $region57: #{tpu_custom_call.1} parent=55 // pred_check
          %p627 = pneg %p167
        $region58: #{tpu_custom_call.1} parent=55 // pred_check_branch
          %629 = sbr.rel (%p627) target = $region60
        $region59: #{tpu_custom_call.1} parent=55 // pred_region
          %s630 = sand.u32 %s152, 1
          %s631 = scalar_lea.sflag [#allocation6], %s630
          %s632 = sand.u32 %s152, 1
          %s633 = smul.addr %s632, 32
          %s634 = scalar_lea.vmem [#allocation9], %s633
          %635 = dma.done %s631, 512
        $region60: #{tpu_custom_call.1} parent=55 // pred_fallthru
          _
      $region56: #{tpu_custom_call.1} parent=5 // pred_fallthru
        _
    $region6: #{tpu_custom_call.1} parent=1 // loop_footer
      %s25 = sadd.s32 1, %s21
    $region7: #{tpu_custom_call.1} parent=1 // loop_footer_branch
      %20 = sbr.rel target = $region3
    $region8: #{tpu_custom_call.1} parent=1 // loop_exit
      _
    %636 = vsyncpa [#allocation5], 1
    %s637 = scalar_lea.sflag [#allocation5], 1
    %638 = vsyncpa %s637, 1
    %639 = vsyncpa [#allocation8], 1
    %s640 = scalar_lea.sflag [#allocation8], 1
    %641 = vsyncpa %s640, 1
    %642 = vsyncpa [#allocation6], 1
    %s643 = scalar_lea.sflag [#allocation6], 1
    %644 = vsyncpa %s643, 1

</llo_original>
